<compile_context>
chip_gen: v6e
topology: v6e:2x2x1
jax: 0.10.0
libtpu: 0.0.40
codegen_flags: <defaults>
</compile_context>

<pallas_src>
import functools

import jax
import jax.numpy as jnp
from jax.experimental import pallas as pl
from jax.experimental.pallas import tpu as pltpu

EPS = 1e-8
_MXU = jnp.bfloat16   # MXU operand dtype (f32 accumulation everywhere)


# ----------------------------------------------------------------------------
# small helpers
# ----------------------------------------------------------------------------
def _round_up(x, m):
    return ((x + m - 1) // m) * m


def _pick_tm(M, cap=512):
    """Largest row tile <= cap that divides M with >=2 grid blocks (no pad/slice);
    fall back to a padded ~half-M tile otherwise."""
    for tm in (512, 384, 256, 192, 128, 96, 64, 48, 32, 24, 16, 8):
        if tm <= cap and M % tm == 0 and M // tm >= 2:
            return tm
    if M <= cap and M % 8 == 0:
        return M
    return max(8, min(cap, _round_up((M + 1) // 2, 8)))


def _cost(flops, nbytes):
    return pl.CostEstimate(flops=int(flops), transcendentals=0,
                           bytes_accessed=int(nbytes))


def _dot(a, w):
    # activations cast here; weights are already bf16 (pre-cast in fuse_params)
    return jnp.dot(a.astype(_MXU), w, preferred_element_type=jnp.float32)


def _prelu(x, alpha):
    return jnp.where(x >= 0, x, alpha * x)


def _gln(y, g, be, eps):
    """Global LayerNorm over the whole (T, C) tile; two-pass mean/var (stable),
    rsqrt rides the EUP slot."""
    n = y.size
    mu = jnp.sum(y) / n
    d = y - mu
    var = jnp.sum(d * d) / n
    return d * jax.lax.rsqrt(var + eps) * g + be


# ----------------------------------------------------------------------------
# kernels
# ----------------------------------------------------------------------------
def _enc_kernel(x_ref, w_ref, b_ref, o_ref):
    # encoder 1x1-on-frames matmul + ReLU
    y = _dot(x_ref[...], w_ref[...]) + b_ref[...]
    o_ref[...] = jnp.maximum(y, 0.0).astype(o_ref.dtype)


def _bottleneck_kernel(x_ref, g_ref, be_ref, w_ref, b_ref, o_ref, *, eps, skip):
    # gLN(in_chan) prologue + bottleneck 1x1 conv; skip lanes of the state are
    # zero-filled by the store (no zero MXU columns), full-lane-dense write.
    y = _gln(x_ref[0], g_ref[...], be_ref[...], eps)
    res = _dot(y, w_ref[...]) + b_ref[...]                      # (T, bn)
    zeros = jnp.zeros((res.shape[0], skip), jnp.float32)
    o_ref[...] = jnp.concatenate([res, zeros], axis=1)[None].astype(o_ref.dtype)


def _tcn_block_kernel(s_ref, w_in_ref, b_in_ref, g1_ref, be1_ref,
                      w_d_ref, b_d_ref, g2_ref, be2_ref, w_rs_ref, b_rs_ref,
                      o_ref, *, K, dil, a1, a2, eps, bn):
    # ONE fused kernel per batch element per TCN block:
    #   h  = gLN(PReLU(state[:, :bn] @ w_in + b_in))
    #   h  = gLN(PReLU(dilated depthwise conv(h)))
    #   state_new = state + h @ [w_res | w_skip] + [b_res | b_skip]
    st = s_ref[0]                                               # (T, S) f32
    h = _dot(st[:, :bn], w_in_ref[...]) + b_in_ref[...]         # (T, H)
    h = _gln(_prelu(h, a1), g1_ref[...], be1_ref[...], eps)

    # dilated depthwise conv ('same'); halo via XLU sublane roll, boundary rows
    # handled with cheap (T,1) masks (single broadcast multiply per tap).
    T = h.shape[0]
    pad = dil * (K - 1) // 2
    t_col = jax.lax.broadcasted_iota(jnp.int32, (T, 1), 0)
    acc = jnp.zeros_like(h) + b_d_ref[...]
    for k in range(K):
        off = k * dil - pad                                     # tap source = t + off
        if off == 0:
            term = w_d_ref[k:k + 1, :] * h
        else:
            tap = pltpu.roll(h, shift=(-off) % T, axis=0)       # XLU rotate (free slot)
            msk = ((t_col + off >= 0) & (t_col + off < T)).astype(jnp.float32)
            term = (w_d_ref[k:k + 1, :] * tap) * msk
        acc = acc + term
    h = _gln(_prelu(acc, a2), g2_ref[...], be2_ref[...], eps)

    o_ref[...] = (st + _dot(h, w_rs_ref[...]) + b_rs_ref[...])[None].astype(o_ref.dtype)


def _maskdec_kernel(s_ref, e_ref, w1_ref, b1_ref, w2_ref, o_ref,
                    *, alpha, n_src, bn, C):
    # mask-net PReLU -> mask 1x1 conv -> ReLU -> mask * enc -> per-source
    # decoder 1x1 (shared weight, no block-diag zeros, no enc_rep copy)
    sk = _prelu(s_ref[...][:, bn:], alpha)                      # (tm, skip)
    score = jnp.maximum(_dot(sk, w1_ref[...]) + b1_ref[...], 0.0)   # (tm, n_src*C)
    enc = e_ref[...]                                            # (tm, C)
    frames = []
    for s in range(n_src):
        mapped = score[:, s * C:(s + 1) * C] * enc              # (tm, C)
        frames.append(_dot(mapped, w2_ref[...]))                # (tm, 16)
    o_ref[...] = jnp.concatenate(frames, axis=1).astype(o_ref.dtype)


# ----------------------------------------------------------------------------
# pallas_call wrappers
# ----------------------------------------------------------------------------
def _row_call(kernel, M, out_n, row_args, full_args, *, flops=0, tm_cap=512):
    """Row-tiled call: row_args are [M, k] arrays tiled along rows; full_args
    (weights/biases) stay resident.  Only used OUTSIDE the TCN loop."""
    tm = _pick_tm(M, tm_cap)
    Mp = _round_up(M, tm)
    if Mp != M:
        row_args = [jnp.pad(a, ((0, Mp - M), (0, 0))) for a in row_args]
    nbytes = (sum(int(a.size) * a.dtype.itemsize for a in row_args)
              + sum(int(a.size) * a.dtype.itemsize for a in full_args)
              + 4 * Mp * out_n)
    in_specs = ([pl.BlockSpec((tm, a.shape[1]), lambda i: (i, 0)) for a in row_args]
                + [pl.BlockSpec(a.shape, lambda i, nd=a.ndim: (0,) * nd)
                   for a in full_args])
    out = pl.pallas_call(
        kernel,
        out_shape=jax.ShapeDtypeStruct((Mp, out_n), jnp.float32),
        grid_spec=pltpu.PrefetchScalarGridSpec(
            num_scalar_prefetch=0,
            grid=(Mp // tm,),
            in_specs=in_specs,
            out_specs=pl.BlockSpec((tm, out_n), lambda i: (i, 0)),
        ),
        compiler_params=pltpu.CompilerParams(dimension_semantics=("parallel",)),
        cost_estimate=_cost(flops, nbytes),
    )(*row_args, *full_args)
    return out[:M] if Mp != M else out


def _batch_call(kernel, x, full_args, out_c, *, flops=0, io_alias=None):
    """Per-batch call: grid over B, whole [T, C] tile resident (needed for gLN).
    vmem_limit_bytes is sized from the actual buffers."""
    B, T, Cin = x.shape
    in_bytes = int(x.size) * x.dtype.itemsize
    w_bytes = sum(int(a.size) * a.dtype.itemsize for a in full_args)
    out_bytes = 4 * B * T * out_c
    step_bytes = 2 * (in_bytes // B) + 2 * (out_bytes // B) + w_bytes
    vmem_limit = int(min(64 << 20, max(32 << 20, 4 * step_bytes)))
    nbytes = in_bytes + w_bytes + out_bytes
    in_specs = ([pl.BlockSpec((1, T, Cin), lambda i: (i, 0, 0))]
                + [pl.BlockSpec(a.shape, lambda i, nd=a.ndim: (0,) * nd)
                   for a in full_args])
    return pl.pallas_call(
        kernel,
        out_shape=jax.ShapeDtypeStruct((B, T, out_c), jnp.float32),
        grid_spec=pltpu.PrefetchScalarGridSpec(
            num_scalar_prefetch=0,
            grid=(B,),
            in_specs=in_specs,
            out_specs=pl.BlockSpec((1, T, out_c), lambda i: (i, 0, 0)),
        ),
        compiler_params=pltpu.CompilerParams(
            dimension_semantics=("parallel",),
            vmem_limit_bytes=vmem_limit),
        cost_estimate=_cost(flops, nbytes),
        input_output_aliases=dict(io_alias or {}),
    )(x, *full_args)


# ----------------------------------------------------------------------------
# parameters (deterministic; natural PyTorch-like shapes, then fused / bf16)
# ----------------------------------------------------------------------------
def init_params(key, *, in_chan, n_src, n_blocks, n_repeats, bn_chan, hid_chan,
                skip_chan, conv_kernel_size):
    out_chan = in_chan
    keys = iter(jax.random.split(key, 512))

    def w(shape, fan_in):
        return (jax.random.normal(next(keys), shape, jnp.float32) /
                jnp.sqrt(jnp.float32(fan_in)))

    p = {}
    p["w_enc"] = w((16, in_chan), 16.0)                 # Conv1d(1, C, 16, 8, 4)
    p["b_enc"] = w((in_chan,), 16.0)
    p["w_dec"] = w((in_chan, 16), in_chan)              # ConvTranspose1d(C, 1, 16, 8, 4)
    p["b_dec"] = w((1,), in_chan)
    p["g0"] = jnp.ones((in_chan,), jnp.float32)         # gLN(in_chan)
    p["be0"] = jnp.zeros((in_chan,), jnp.float32)
    p["w_bn"] = w((in_chan, bn_chan), in_chan)          # Conv1d(C, bn, 1)
    p["b_bn"] = w((bn_chan,), in_chan)
    blocks = []
    for _r in range(n_repeats):
        for x in range(n_blocks):
            blocks.append(dict(
                dilation=2 ** x,
                w_in=w((bn_chan, hid_chan), bn_chan), b_in=w((hid_chan,), bn_chan),
                a1=0.25,
                g1=jnp.ones((hid_chan,), jnp.float32),
                be1=jnp.zeros((hid_chan,), jnp.float32),
                w_d=w((conv_kernel_size, hid_chan), conv_kernel_size),
                b_d=w((hid_chan,), conv_kernel_size),
                a2=0.25,
                g2=jnp.ones((hid_chan,), jnp.float32),
                be2=jnp.zeros((hid_chan,), jnp.float32),
                w_res=w((hid_chan, bn_chan), hid_chan), b_res=w((bn_chan,), hid_chan),
                w_skip=w((hid_chan, skip_chan), hid_chan), b_skip=w((skip_chan,), hid_chan),
            ))
    p["blocks"] = blocks
    p["a_mask"] = 0.25
    p["w_mask"] = w((skip_chan, n_src * out_chan), skip_chan)
    p["b_mask"] = w((n_src * out_chan,), skip_chan)
    return p


def fuse_params(p, cfg):
    """Fuse res/skip projections, pre-cast matmul weights to bf16 once
    (halves weight DMA, no per-step casts).  No structural-zero padding:
    in-conv / mask conv consume lane slices of the state instead."""
    def row(v):
        return v.reshape(1, -1).astype(jnp.float32)

    def mxu(w):
        return w.astype(_MXU)

    f = {}
    f["w_enc"], f["b_enc"] = mxu(p["w_enc"]), row(p["b_enc"])
    f["g0"], f["be0"] = row(p["g0"]), row(p["be0"])
    f["w_bn"], f["b_bn"] = mxu(p["w_bn"]), row(p["b_bn"])
    blocks = []
    for blk in p["blocks"]:
        blocks.append(dict(
            dilation=blk["dilation"], a1=blk["a1"], a2=blk["a2"],
            w_in=mxu(blk["w_in"]), b_in=row(blk["b_in"]),
            g1=row(blk["g1"]), be1=row(blk["be1"]),
            w_d=blk["w_d"].astype(jnp.float32), b_d=row(blk["b_d"]),   # VPU path stays f32
            g2=row(blk["g2"]), be2=row(blk["be2"]),
            # fused residual/skip projection (no zeros)
            w_rs=mxu(jnp.concatenate([blk["w_res"], blk["w_skip"]], axis=1)),
            b_rs=row(jnp.concatenate([blk["b_res"], blk["b_skip"]])),
        ))
    f["blocks"] = blocks
    f["a_mask"] = p["a_mask"]
    f["w_mask"], f["b_mask"] = mxu(p["w_mask"]), row(p["b_mask"])
    f["w_dec"] = mxu(p["w_dec"])          # shared per source; no block-diag zeros
    f["b_dec"] = p["b_dec"]
    return f


# ----------------------------------------------------------------------------
# full ConvTasNet forward
# ----------------------------------------------------------------------------
def conv_tasnet_forward(mix, f, cfg):
    B, _, L = mix.shape
    C = cfg["in_chan"]
    n_src = cfg["n_src"]
    K = cfg["conv_kernel_size"]
    bn, skip, H = cfg["bn_chan"], cfg["skip_chan"], cfg["hid_chan"]
    S = bn + skip            # keep S a multiple of 128 for lane-dense state stores

    # ---------------- encoder: Conv1d(1, C, 16, 8, 4) + ReLU ----------------
    x = mix[:, 0, :]
    xp = jnp.pad(x, ((0, 0), (4, 4)))
    T = (L + 8 - 16) // 8 + 1
    # framing via reshapes (stride 8, kernel 16 = two half-frames), no gather
    fa = xp[:, :8 * T].reshape(B, T, 8)
    fb = xp[:, 8:8 + 8 * T].reshape(B, T, 8)
    frames = jnp.concatenate([fa, fb], axis=-1).reshape(B * T, 16)
    M = B * T
    enc2 = _row_call(_enc_kernel, M, C, [frames], [f["w_enc"], f["b_enc"]],
                     flops=2 * M * 16 * C)                       # [M, C]
    enc = enc2.reshape(B, T, C)

    # -------- bottleneck: gLN(C) + 1x1 conv -> state = [res | skip_sum=0] ---
    state = _batch_call(functools.partial(_bottleneck_kernel, eps=EPS, skip=skip),
                        enc, [f["g0"], f["be0"], f["w_bn"], f["b_bn"]], S,
                        flops=2 * M * C * bn)                    # [B, T, S]

    # ---------------- TCN: one fused per-batch kernel per block -------------
    for blk in f["blocks"]:
        state = _batch_call(
            functools.partial(_tcn_block_kernel, K=K, dil=blk["dilation"],
                              a1=blk["a1"], a2=blk["a2"], eps=EPS, bn=bn),
            state,
            [blk["w_in"], blk["b_in"], blk["g1"], blk["be1"],
             blk["w_d"], blk["b_d"], blk["g2"], blk["be2"],
             blk["w_rs"], blk["b_rs"]],
            S,
            flops=2 * M * bn * H + 2 * M * K * H + 2 * M * H * S,
            io_alias={0: 0})                                     # in-place state

    # ------ mask net + ReLU + mask * enc + decoder 1x1 (all fused) ----------
    # lane order of the mask is src-major (s*C + c), matching the reference's
    # score.view(B, n_src, out_chan, T); mask_act='relu' as in the module spec.
    fr = _row_call(functools.partial(_maskdec_kernel, alpha=f["a_mask"],
                                     n_src=n_src, bn=bn, C=C),
                   M, n_src * 16,
                   [state.reshape(M, S), enc2],
                   [f["w_mask"], f["b_mask"], f["w_dec"]],
                   flops=2 * M * skip * (n_src * C) + 2 * M * n_src * C * 16,
                   tm_cap=256)

    # ---- overlap-add for ConvTranspose1d(C, 1, 16, stride 8, pad 4) --------
    fr = fr.reshape(B, T, n_src, 16).transpose(0, 2, 1, 3).reshape(B * n_src, T, 16)
    part_a = fr[:, :, :8].reshape(B * n_src, T * 8)
    part_b = fr[:, :, 8:].reshape(B * n_src, T * 8)
    z = jnp.zeros((B * n_src, 8), jnp.float32)
    full = jnp.concatenate([part_a, z], axis=1) + jnp.concatenate([z, part_b], axis=1)
    est = full[:, 4:4 + 8 * T] + f["b_dec"][0]
    est = est.reshape(B, n_src, 8 * T)

    # F.pad(est_src, [0, seq_len - est_seq_len])
    est = jnp.pad(est, ((0, 0), (0, 0), (0, L - 8 * T)))
    return est


# ----------------------------------------------------------------------------
if __name__ == "__main__":
    # Small but 128-lane-aligned config (bn, skip, hid, in_chan multiples of
    # 128 -> all in-kernel lane slices are vreg-aligned, state S=256 lane-dense).
    cfg = dict(in_chan=128, n_src=2, n_blocks=2, n_repeats=2, bn_chan=128,
               hid_chan=128, skip_chan=128, conv_kernel_size=3)

    root = jax.random.PRNGKey(0)
    k_param, k_mix = jax.random.split(root)
    raw = init_params(k_param, **cfg)
    params = fuse_params(raw, cfg)

    B, L = 2, 260
    mix = jax.random.normal(k_mix, (B, 1, L), dtype=jnp.float32)

    out = conv_tasnet_forward(mix, params, cfg)
    out = jax.block_until_ready(out)

    assert out.shape == (B, cfg["n_src"], L), out.shape
    assert bool(jnp.all(jnp.isfinite(out)))
    print("KERNEL_OK")
</pallas_src>

<mosaic_0001>
module attributes {stable_mosaic.version = 11 : i64} {
  func.func @_enc_kernel(%arg0: i32, %arg1: memref<32x16xf32, #tpu.memory_space<vmem>>, %arg2: memref<16x128xbf16, #tpu.memory_space<vmem>>, %arg3: memref<1x128xf32, #tpu.memory_space<vmem>>, %arg4: memref<32x128xf32, #tpu.memory_space<vmem>>) attributes {dimension_semantics = [#tpu.dimension_semantics<parallel>], iteration_bounds = array<i64: 2>, scalar_prefetch = 0 : i64, scratch_operands = 0 : i64, tpu.core_type = #tpu.core_type<tc>, window_params = [{transform_indices = @transform_0, window_bounds = array<i64: 32, 16>}, {pipeline_mode = #tpu.pipeline_mode<synchronous>, transform_indices = @transform_1, window_bounds = array<i64: 16, 128>}, {pipeline_mode = #tpu.pipeline_mode<synchronous>, transform_indices = @transform_2, window_bounds = array<i64: 1, 128>}, {transform_indices = @transform_3, window_bounds = array<i64: 32, 128>}]} {
    %c0 = arith.constant 0 : index
    %c0_0 = arith.constant 0 : index
    %0 = vector.load %arg1[%c0, %c0_0] : memref<32x16xf32, #tpu.memory_space<vmem>>, vector<32x16xf32>
    %c0_1 = arith.constant 0 : index
    %c0_2 = arith.constant 0 : index
    %1 = vector.load %arg2[%c0_1, %c0_2] : memref<16x128xbf16, #tpu.memory_space<vmem>>, vector<16x128xbf16>
    %2 = arith.truncf %0 : vector<32x16xf32> to vector<32x16xbf16>
    %cst = arith.constant dense<0.000000e+00> : vector<32x128xf32>
    %3 = tpu.matmul %2, %1, %cst {dimension_numbers = #tpu.dot_dimension_numbers<[1], [0], [0], [1], [0, 0, 1, 1], [], []>} : vector<32x16xbf16>, vector<16x128xbf16>, vector<32x128xf32> -> vector<32x128xf32>
    %c0_3 = arith.constant 0 : index
    %c0_4 = arith.constant 0 : index
    %4 = vector.load %arg3[%c0_3, %c0_4] : memref<1x128xf32, #tpu.memory_space<vmem>>, vector<1x128xf32>
    %5 = vector.broadcast %4 : vector<1x128xf32> to vector<32x128xf32>
    %6 = arith.addf %3, %5 : vector<32x128xf32>
    %cst_5 = arith.constant 0.000000e+00 : f32
    %7 = vector.broadcast %cst_5 : f32 to vector<32x128xf32>
    %8 = arith.maximumf %6, %7 : vector<32x128xf32>
    %c0_6 = arith.constant 0 : index
    %c0_7 = arith.constant 0 : index
    %9 = vector.load %arg4[%c0_6, %c0_7] : memref<32x128xf32, #tpu.memory_space<vmem>>, vector<32x128xf32>
    tpu.vector_store %arg4[%c0_6, %c0_7], %8 {strides = array<i32>} : memref<32x128xf32, #tpu.memory_space<vmem>>, vector<32x128xf32>,
    return
  }
  func.func @transform_0(%arg0: i32) -> (i32, i32) {
    %c0_i32 = arith.constant 0 : i32
    %c0_i32_0 = arith.constant 0 : i32
    return %arg0, %c0_i32 : i32, i32
  }
  func.func @transform_1(%arg0: i32) -> (i32, i32) {
    %c0_i32 = arith.constant 0 : i32
    %c0_i32_0 = arith.constant 0 : i32
    %c0_i32_1 = arith.constant 0 : i32
    return %c0_i32, %c0_i32_0 : i32, i32
  }
  func.func @transform_2(%arg0: i32) -> (i32, i32) {
    %c0_i32 = arith.constant 0 : i32
    %c0_i32_0 = arith.constant 0 : i32
    %c0_i32_1 = arith.constant 0 : i32
    return %c0_i32, %c0_i32_0 : i32, i32
  }
  func.func @transform_3(%arg0: i32) -> (i32, i32) {
    %c0_i32 = arith.constant 0 : i32
    %c0_i32_0 = arith.constant 0 : i32
    return %arg0, %c0_i32 : i32, i32
  }
}

</mosaic_0001>

<llo_original>
// kernel: tpu_custom_call.1
$region0: #{tpu_custom_call.1}
  #allocation0 [shape = 'u32[]', space=smem, size = 0x4, offset = 0x4, fixed_abs, tag = 'smem constant byte address 0x4 - core index']
  #allocation1 [shape = 'u32[144,128]{1,0:T(1,128)}', space=vmem, size = 0x12000, scoped, tag = 'internal scratch']
  %s0 = inlined_call_operand.vmem [shape: f32[64,16], index: 0, kind: input, shape index: {}]
  %s1 = inlined_call_operand.vmem [shape: bf16[16,128], index: 1, kind: input, shape index: {}]
  %s2 = inlined_call_operand.vmem [shape: f32[1,128], index: 2, kind: input, shape index: {}]
  %s3 = inlined_call_operand.hbm [shape: f32[64,128], index: 3, kind: output, shape index: {}]
  %s4 = sld [smem:[#allocation0]]
  $region45: #{tpu_custom_call.1} parent=0
    _
  %s6 = ssub.s32 1, %s4
  %s7 = scalar_select 0, %s6, %s4
  $region1: #{tpu_custom_call.1} parent=0
    #allocation2 [shape = 'u8[32768]{0}', space=vmem, size = 0x8000, scoped, tag = 'output window, operand 0']
    #allocation3 [shape = 's32[2]{0}', space=sflag, size = 0x8, scoped, tag = 'scoped memory for tpu_custom_call.1']
    %8 = vsyncpa [#allocation3], 0
    %s9 = scalar_lea.sflag [#allocation3], 1
    %10 = vsyncpa %s9, 0
    loop: start=0, step=1, limit=4
    $region2: #{tpu_custom_call.1} parent=1 // loop_pre_header
      _
    $region3: #{tpu_custom_call.1} parent=1 // loop_header
      %s12 = sphi 0, %s16
      %p13 = scmp.ge.s32.totalorder %s12, 4
      %s22 = sphi 0, %s24
      %s25 = sphi 0, %s22
      %s26 = sphi 0, %s25
      %s42 = sphi 0, %s26
      %s46 = sphi 0, %s46
      %s48 = sphi 0, %s46
      %s49 = sphi 0, %s48
      %s63 = sphi 0, %s49
      %s67 = sphi 0, %s67
      %s69 = sphi 0, %s67
      %s70 = sphi 0, %s69
      %s84 = sphi 0, %s70
      %s90 = sphi 0, %s92
      %s93 = sphi 0, %s90
      %s94 = sphi 0, %s93
      %s110 = sphi 0, %s94
    $region4: #{tpu_custom_call.1} parent=1 // loop_header_branch
      %15 = sbr.rel (%p13) target = $region8
    $region5: #{tpu_custom_call.1} parent=1 // loop_body
      %s17 = ssub.s32 %s12, 1
      %s18 = ssub.s32 %s12, 2
      %s19 = sadd.s32 %s12, 1
      %s20 = ssub.s32 %s12, %s19
      %p21 = scmp.eq.s32.totalorder %s20, 0
      %s23 = sadd.s32 %s22, 1
      %s24 = scalar_select %p21, %s22, %s23
      %p27 = pneg %p21
      %p28 = scmp.eq.s32.totalorder %s12, 1
      %p29 = por %p27, %p28
      %p30 = scmp.ne.s32.totalorder %s22, %s25
      %p31 = scmp.eq.s32.totalorder %s12, 0
      %p32 = por %p30, %p31
      %p33 = scmp.ne.s32.totalorder %s22, %s25
      %p34 = scmp.eq.s32.totalorder %s17, 1
      %p35 = por %p33, %p34
      %p36 = scmp.ne.s32.totalorder %s25, %s26
      %p37 = scmp.eq.s32.totalorder %s17, 0
      %p38 = por %p36, %p37
      %p39 = scmp.ne.s32.totalorder %s25, %s26
      %p40 = scmp.eq.s32.totalorder %s18, 1
      %p41 = por %p39, %p40
      %p43 = scmp.ne.s32.totalorder %s26, %s42
      %p44 = scmp.eq.s32.totalorder %s18, 0
      %p45 = por %p43, %p44
      %s47 = sadd.s32 %s46, 1
      %p50 = scmp.eq.s32.totalorder %s12, 1
      %p51 = scmp.ne.s32.totalorder %s46, %s48
      %p52 = scmp.eq.s32.totalorder %s12, 0
      %p53 = por %p51, %p52
      %p54 = scmp.ne.s32.totalorder %s46, %s48
      %p55 = scmp.eq.s32.totalorder %s17, 1
      %p56 = por %p54, %p55
      %p57 = scmp.ne.s32.totalorder %s48, %s49
      %p58 = scmp.eq.s32.totalorder %s17, 0
      %p59 = por %p57, %p58
      %p60 = scmp.ne.s32.totalorder %s48, %s49
      %p61 = scmp.eq.s32.totalorder %s18, 1
      %p62 = por %p60, %p61
      %p64 = scmp.ne.s32.totalorder %s49, %s63
      %p65 = scmp.eq.s32.totalorder %s18, 0
      %p66 = por %p64, %p65
      %s68 = sadd.s32 %s67, 1
      %p71 = scmp.eq.s32.totalorder %s12, 1
      %p72 = scmp.ne.s32.totalorder %s67, %s69
      %p73 = scmp.eq.s32.totalorder %s12, 0
      %p74 = por %p72, %p73
      %p75 = scmp.ne.s32.totalorder %s67, %s69
      %p76 = scmp.eq.s32.totalorder %s17, 1
      %p77 = por %p75, %p76
      %p78 = scmp.ne.s32.totalorder %s69, %s70
      %p79 = scmp.eq.s32.totalorder %s17, 0
      %p80 = por %p78, %p79
      %p81 = scmp.ne.s32.totalorder %s69, %s70
      %p82 = scmp.eq.s32.totalorder %s18, 1
      %p83 = por %p81, %p82
      %p85 = scmp.ne.s32.totalorder %s70, %s84
      %p86 = scmp.eq.s32.totalorder %s18, 0
      %p87 = por %p85, %p86
      %s88 = ssub.s32 %s12, %s19
      %p89 = scmp.eq.s32.totalorder %s88, 0
      %s91 = sadd.s32 %s90, 1
      %s92 = scalar_select %p89, %s90, %s91
      %p95 = pneg %p89
      %p96 = scmp.eq.s32.totalorder %s12, 1
      %p97 = por %p95, %p96
      %p98 = scmp.ne.s32.totalorder %s90, %s93
      %p99 = scmp.eq.s32.totalorder %s12, 0
      %p100 = por %p98, %p99
      %p101 = scmp.ne.s32.totalorder %s90, %s93
      %p102 = scmp.eq.s32.totalorder %s17, 1
      %p103 = por %p101, %p102
      %p104 = scmp.ne.s32.totalorder %s93, %s94
      %p105 = scmp.eq.s32.totalorder %s17, 0
      %p106 = por %p104, %p105
      %p107 = scmp.ne.s32.totalorder %s93, %s94
      %p108 = scmp.eq.s32.totalorder %s18, 1
      %p109 = por %p107, %p108
      %p111 = scmp.ne.s32.totalorder %s94, %s110
      %p112 = scmp.eq.s32.totalorder %s18, 0
      %p113 = por %p111, %p112
      %p114 = scmp.le.s32.totalorder 1, %s12
      %p115 = scmp.lt.s32.totalorder %s12, 3
      %p116 = pnand %p114, %p115
      %p117 = pneg %p116
      // Predicated region
      $region9: #{tpu_custom_call.1} parent=5 // pred_check
        _
      $region10: #{tpu_custom_call.1} parent=5 // pred_check_branch
        %119 = sbr.rel (%p116) target = $region12
      $region11: #{tpu_custom_call.1} parent=5 // pred_region
        %s120 = ssub.s32 %s12, 1
        // Predicated region
        $region13: #{tpu_custom_call.1} parent=11 // pred_check
          %p121 = pneg %p59
        $region14: #{tpu_custom_call.1} parent=11 // pred_check_branch
          %123 = sbr.rel (%p121) target = $region16
        $region15: #{tpu_custom_call.1} parent=11 // pred_region
          _
        $region16: #{tpu_custom_call.1} parent=11 // pred_fallthru
          _
        // Predicated region
        $region17: #{tpu_custom_call.1} parent=11 // pred_check
          %p124 = pneg %p80
        $region18: #{tpu_custom_call.1} parent=11 // pred_check_branch
          %126 = sbr.rel (%p124) target = $region20
        $region19: #{tpu_custom_call.1} parent=11 // pred_region
          _
        $region20: #{tpu_custom_call.1} parent=11 // pred_fallthru
          _
      $region12: #{tpu_custom_call.1} parent=5 // pred_fallthru
        _
      %p127 = scmp.lt.s32.totalorder %s12, 2
      // Predicated region
      $region21: #{tpu_custom_call.1} parent=5 // pred_check
        %p128 = pneg %p127
      $region22: #{tpu_custom_call.1} parent=5 // pred_check_branch
        %130 = sbr.rel (%p128) target = $region24
      $region23: #{tpu_custom_call.1} parent=5 // pred_region
        // Predicated region
        $region25: #{tpu_custom_call.1} parent=23 // pred_check
          %p131 = pneg %p32
        $region26: #{tpu_custom_call.1} parent=23 // pred_check_branch
          %133 = sbr.rel (%p131) target = $region28
        $region27: #{tpu_custom_call.1} parent=23 // pred_region
          %s134 = smul.u32 4, %s12
          %p135 = scmp.lt.s32.totalorder %s134, 7
          %s136 = scalar_select %p135, %s134, 7
          %s137 = smul.addr %s136, 8
          %s138 = scalar_lea.vmem %s0, %s137
          %s139 = smul.u32 4, %s12
        $region28: #{tpu_custom_call.1} parent=23 // pred_fallthru
          _
      $region24: #{tpu_custom_call.1} parent=5 // pred_fallthru
        _
      %p140 = scmp.le.s32.totalorder 1, %s12
      %p141 = scmp.lt.s32.totalorder %s12, 3
      %p142 = pnand %p140, %p141
      %p143 = pneg %p142
      // Predicated region
      $region29: #{tpu_custom_call.1} parent=5 // pred_check
        _
      $region30: #{tpu_custom_call.1} parent=5 // pred_check_branch
        %145 = sbr.rel (%p142) target = $region32
      $region31: #{tpu_custom_call.1} parent=5 // pred_region
        %s146 = ssub.s32 %s12, 1
        %s147 = smul.u32 4, %s17
        %p148 = scmp.lt.s32.totalorder %s147, 7
        %s149 = scalar_select %p148, %s147, 7
        %s150 = smul.addr %s149, 8
        %s151 = scalar_lea.vmem %s0, %s150
        %p152 = pneg %p38
        %p153 = pneg %p35
        %p154 = pneg %p59
        %p155 = pneg %p56
        %p156 = pneg %p80
        %p157 = pneg %p77
        %p158 = pneg %p106
        %p159 = pneg %p103
        %s160 = sand.u32 %s93, 1
        %s161 = scalar_lea.sflag [#allocation3], %s160
        %s162 = sand.u32 %s93, 1
        %s163 = smul.addr %s162, 32
        %s164 = scalar_lea.vmem [#allocation2], %s163
        %s165 = smul.u32 4, %s17
        %p166 = scmp.lt.s32.totalorder %s165, 7
        %s167 = scalar_select %p166, %s165, 7
        %s168 = smul.addr %s167, 8
        %s169 = scalar_lea.vmem %s0, %s168
        %s170 = smul.u32 4, %s17
        %s171 = smul.u32 4, %s17
        %v173 = vld [vmem:[%s169] sm:$0xff]
        %v174 = vld [vmem:[%s169 + $0x8] sm:$0xff]
        %v175 = vld [vmem:[%s169 + $0x10] sm:$0xff]
        %v176 = vld [vmem:[%s169 + $0x18] sm:$0xff]
        %v177 = vld [vmem:[%s1] sm:$0xf]
        %v178 = vld [vmem:[%s1 + $0x4] sm:$0xf]
        %v179 = vpack.c.bf16 %v174, %v173
        %v180 = vpack.c.bf16 %v176, %v175
        %v181 = vld [vmem:[%s2] sm:$0x1]
        %v183 = vlaneseq
        %v184 = vshrl.u32 %v183, 7
        %v185 = vsub.s32 0, %v184
        %v186 = vrot.slane %v181, %v185
        %v190 = vunpack.c.l.b16 %v177
        %v191 = vunpack.c.l.b16 %v178
        %v192 = vpack.c.b16 %v191, %v190
        %vm194 = vcmask 130048
        %v196 = vsel %vm194, %v179, 0
        %v199 = vsel %vm194, %v180, 0
        %201 = vmatprep.subr.bf16.mxu0 0
        %202 = vmatpush1.bf16.msra.mxu0 0
        %203 = vmatprep.subr.bf16.mxu0 0
        %204 = vmatpush1.bf16.msra.mxu0 0
        %205 = vmatprep.subr.bf16.mxu0 0
        %206 = vmatpush1.bf16.msra.mxu0 0
        %207 = vmatprep.subr.bf16.mxu0 0
        %208 = vmatpush1.bf16.msra.mxu0 0
        %209 = vmatprep.subr.bf16.mxu0 0
        %210 = vmatpush1.bf16.msra.mxu0 0
        %211 = vmatprep.subr.bf16.mxu0 0
        %212 = vmatpush1.bf16.msra.mxu0 0
        %213 = vmatprep.subr.bf16.mxu0 0
        %214 = vmatpush1.bf16.msra.mxu0 0
        %215 = vmatprep.subr.bf16.mxu0 0
        %216 = vmatpush1.bf16.msra.mxu0 %v192
        %217 = vmatprep.subr.bf16.mxu0 0
        %218 = vmatpush2.bf16.msra.mxu0 0
        %219 = vmatprep.subr.bf16.mxu0 0
        %220 = vmatpush2.bf16.msra.mxu0 0
        %221 = vmatprep.subr.bf16.mxu0 0
        %222 = vmatpush2.bf16.msra.mxu0 0
        %223 = vmatprep.subr.bf16.mxu0 0
        %224 = vmatpush2.bf16.msra.mxu0 0
        %225 = vmatprep.subr.bf16.mxu0 0
        %226 = vmatpush2.bf16.msra.mxu0 0
        %227 = vmatprep.subr.bf16.mxu0 0
        %228 = vmatpush2.bf16.msra.mxu0 0
        %229 = vmatprep.subr.bf16.mxu0 0
        %230 = vmatpush2.bf16.msra.mxu0 0
        %231 = vmatprep.subr.bf16.mxu0 0
        %232 = vmatpush2.bf16.msra.mxu0 0
        %233 = vmatprep.mubr.bf16.mxu0 0
        %234 = vmatmul.mubr.bf16.gmra.mxu0 %v196
        %v235 = vpop.f32.mrf.mxu0
        %v236 = vadd.f32 %v186, %v235
        %v237 = vpop.f32.mrf.mxu0
        %v238 = vpop.f32.mrf.mxu0
        %v239 = vadd.f32 %v186, %v238
        %v240 = vpop.f32.mrf.mxu0
        %241 = vmatprep.mubr.bf16.mxu0 0
        %242 = vmatmul.mubr.bf16.gmra.mxu0 %v199
        %v243 = vpop.f32.mrf.mxu0
        %v244 = vadd.f32 %v186, %v243
        %v245 = vpop.f32.mrf.mxu0
        %v246 = vpop.f32.mrf.mxu0
        %v247 = vadd.f32 %v186, %v246
        %v248 = vpop.f32.mrf.mxu0
        %249 = vdwg.mxu0
        %v250 = vmax.f32 %v236, 0.0
        %v251 = vmax.f32 %v239, 0.0
        %v252 = vmax.f32 %v244, 0.0
        %v253 = vmax.f32 %v247, 0.0
        %254 = vst [vmem:[%s164] sm:$0xff] %v250
        %255 = vst [vmem:[%s164 + $0x8] sm:$0xff] %v251
        %256 = vst [vmem:[%s164 + $0x10] sm:$0xff] %v252
        %257 = vst [vmem:[%s164 + $0x18] sm:$0xff] %v253
        %s258 = sand.u32 %s93, 1
        %s259 = scalar_lea.sflag [#allocation3], %s258
        %s260 = sand.u32 %s93, 1
        %s261 = smul.addr %s260, 32
        %s262 = scalar_lea.vmem [#allocation2], %s261
        // Predicated region
        $region33: #{tpu_custom_call.1} parent=31 // pred_check
          %p263 = pneg %p103
        $region34: #{tpu_custom_call.1} parent=31 // pred_check_branch
          %265 = sbr.rel (%p263) target = $region36
        $region35: #{tpu_custom_call.1} parent=31 // pred_region
          %s266 = smul.u32 4, %s17
          %s268 = ssub.s32 512, 512
          %269 = vsyncadd %s259, %s268
          %s270 = smul.addr %s266, 128
          %s271 = scalar_lea.hbm %s3, %s270
          %s272 = sshll.u32 %s262, 4
          %s273 = int_to_ptr.vmem [resolvable:$true] %s272
          %278 = dma.vmem_to_hbm [thread:$0]  %s273, 512, %s271, %s259, 128, 128, 8
        $region36: #{tpu_custom_call.1} parent=31 // pred_fallthru
          _
      $region32: #{tpu_custom_call.1} parent=5 // pred_fallthru
        _
      %p279 = scmp.le.s32.totalorder 2, %s12
      // Predicated region
      $region37: #{tpu_custom_call.1} parent=5 // pred_check
        %p280 = pneg %p279
      $region38: #{tpu_custom_call.1} parent=5 // pred_check_branch
        %282 = sbr.rel (%p280) target = $region40
      $region39: #{tpu_custom_call.1} parent=5 // pred_region
        %s283 = ssub.s32 %s12, 2
        // Predicated region
        $region41: #{tpu_custom_call.1} parent=39 // pred_check
          %p284 = pneg %p109
        $region42: #{tpu_custom_call.1} parent=39 // pred_check_branch
          %286 = sbr.rel (%p284) target = $region44
        $region43: #{tpu_custom_call.1} parent=39 // pred_region
          %s287 = sand.u32 %s94, 1
          %s288 = scalar_lea.sflag [#allocation3], %s287
          %s289 = sand.u32 %s94, 1
          %s290 = smul.addr %s289, 32
          %s291 = scalar_lea.vmem [#allocation2], %s290
          %292 = dma.done %s288, 512
        $region44: #{tpu_custom_call.1} parent=39 // pred_fallthru
          _
      $region40: #{tpu_custom_call.1} parent=5 // pred_fallthru
        _
    $region6: #{tpu_custom_call.1} parent=1 // loop_footer
      %s16 = sadd.s32 1, %s12
    $region7: #{tpu_custom_call.1} parent=1 // loop_footer_branch
      %11 = sbr.rel target = $region3
    $region8: #{tpu_custom_call.1} parent=1 // loop_exit
      _
    %293 = vsyncpa [#allocation3], 1
    %s294 = scalar_lea.sflag [#allocation3], 1
    %295 = vsyncpa %s294, 1

</llo_original>
